<compile_context>
chip_gen: v6e
topology: v6e:2x2x1
jax: 0.10.0
libtpu: 0.0.40
codegen_flags: <defaults>
</compile_context>

<pallas_src>
import math
from typing import NamedTuple

import jax
import jax.numpy as jnp
from jax.experimental import pallas as pl
from jax.experimental.pallas import tpu as pltpu


def _round_up(n, m):
    return ((n + m - 1) // m) * m


# ----------------------------------------------------------------------------
# Kernel body: fc1 -> ReLU -> fc2 -> sigmoid, all fused on one (TM, *) row tile.
# Weights arrive pre-transposed to (in, out), so both contractions are plain
# MXU dots with no in-kernel transpose.
# ----------------------------------------------------------------------------
def cr_kernel(x_ref, w1_ref, b1_ref, w2_ref, b2_ref, o_ref):
    # fc1: (TM, C) @ (C, Cp) -> f32 accumulator.
    h = jnp.dot(x_ref[...], w1_ref[...], preferred_element_type=jnp.float32)
    # Bias + ReLU in f32 on the VPU.
    h = jnp.maximum(h + b1_ref[...], 0.0)
    # fc2: cast only at the dot boundary (bf16 path); accumulate in f32.
    y = jnp.dot(h.astype(w2_ref.dtype), w2_ref[...],
                preferred_element_type=jnp.float32)
    y = y + b2_ref[...]
    o_ref[...] = jax.nn.sigmoid(y).astype(o_ref.dtype)


# ----------------------------------------------------------------------------
# One-time parameter preparation (transpose / cast / pad). Amortized across all
# forward calls — keeps per-call wrapper work to ~zero HBM copies.
# ----------------------------------------------------------------------------
class CRParams(NamedTuple):
    w1t: jax.Array   # (C, Cp)   fc1 weight, transposed to (in, out), out-dim padded
    b1: jax.Array    # (1, Cp)   f32
    w2t: jax.Array   # (Cp, Cp)  fc2 weight, transposed, both dims padded
    b2: jax.Array    # (1, Cp)   f32
    in_channels: int
    padded_channels: int


def prepare_params(w1, b1, w2, b2, *, compute_dtype=None):
    """w1, w2: PyTorch-style (out, in); b1, b2: (out,)."""
    C = w1.shape[1]
    # Lane-dense output padding. For 16-bit operands at large C, round to 256
    # (native width of the v6e/v7x 2x256^2 MXU); otherwise 128.
    lane = 256 if (compute_dtype is not None
                   and jnp.dtype(compute_dtype).itemsize <= 2
                   and C >= 256) else 128
    Cp = _round_up(C, lane)

    w1t = w1.T   # (in, out)
    w2t = w2.T   # (in, out)
    if compute_dtype is not None:
        w1t = w1t.astype(compute_dtype)
        w2t = w2t.astype(compute_dtype)
    if Cp != C:
        # Padding is mathematically transparent: padded fc1 output columns are
        # ReLU(0 + 0) = 0; padded fc2 rows/cols are zero; padded output columns
        # are sliced off after the kernel.
        w1t = jnp.pad(w1t, ((0, 0), (0, Cp - C)))
        w2t = jnp.pad(w2t, ((0, Cp - C), (0, Cp - C)))
        b1 = jnp.pad(b1, (0, Cp - C))
        b2 = jnp.pad(b2, (0, Cp - C))

    return CRParams(w1t,
                    b1.reshape(1, Cp).astype(jnp.float32),
                    w2t,
                    b2.reshape(1, Cp).astype(jnp.float32),
                    C, Cp)


# ----------------------------------------------------------------------------
# Forward pass with pre-prepared params (the hot path).
# ----------------------------------------------------------------------------
def cr_forward_prepared(x, params: CRParams, *, tm=512, out_dtype=None,
                        vmem_budget=48 << 20):
    orig_shape = x.shape
    C, Cp = params.in_channels, params.padded_channels
    assert orig_shape[-1] == C, "last dim of x must equal in_channels"
    if out_dtype is None:
        out_dtype = x.dtype

    M = max(1, math.prod(orig_shape[:-1]))
    x2d = x.reshape(M, C)
    # If the weights are narrower (bf16 path), cast x so the dot hits the
    # native MXU datapath instead of silently promoting everything to f32.
    if jnp.dtype(params.w1t.dtype).itemsize < jnp.dtype(x2d.dtype).itemsize:
        x2d = x2d.astype(params.w1t.dtype)

    x_item = jnp.dtype(x2d.dtype).itemsize
    w_item = jnp.dtype(params.w1t.dtype).itemsize
    o_item = jnp.dtype(out_dtype).itemsize

    def vmem_need(tm_):
        weights = (C * Cp + Cp * Cp) * w_item + 2 * Cp * 4       # single-buffered
        xio = 2 * tm_ * C * x_item + 2 * tm_ * Cp * o_item        # double-buffered
        scratch = 2 * tm_ * Cp * 4                                # h f32 + cast temp
        return weights + xio + scratch

    # Row tile: multiple of 8, bounded by the VMEM budget.
    TM = _round_up(min(tm, _round_up(M, 8)), 8)
    while TM > 64 and vmem_need(TM) > vmem_budget:
        TM = _round_up(max(TM // 2, 8), 8)
    # v7x megacore: guarantee >= 2 grid steps so the "parallel" M axis can be
    # sharded across the two TensorCores (no effect on v5e/v6e).
    if pl.cdiv(M, TM) < 2 and M > 256:
        TM = _round_up(-(-M // 2), 8)
    grid = (pl.cdiv(M, TM),)

    vmem_limit = min(int(vmem_need(TM) * 1.25) + (4 << 20), 128 << 20)

    cost = pl.CostEstimate(
        flops=2 * M * C * Cp + 2 * M * Cp * Cp,          # fc1 + fc2
        transcendentals=M * Cp,                          # sigmoid
        bytes_accessed=(M * C * x_item + M * Cp * o_item
                        + (C * Cp + Cp * Cp) * w_item + 2 * Cp * 4),
    )

    # TODO(synk): for very large in_channels (f32 weights no longer fitting the
    # v7x 64 MiB VMEM, roughly Cp >= 2048) add an fc2 output-column grid axis
    # instead of keeping both weight matrices fully resident.

    def _call(single_buffer):
        resident = ({"pipeline_mode": pl.Buffered(1)} if single_buffer else {})
        return pl.pallas_call(
            cr_kernel,
            out_shape=jax.ShapeDtypeStruct((M, Cp), out_dtype),
            grid_spec=pl.GridSpec(
                grid=grid,
                in_specs=[
                    # x row tile: pipelined, contraction dim stays unpadded C.
                    pl.BlockSpec((TM, C), lambda i: (i, 0)),
                    # Weights / biases: VMEM-resident, single-buffered.
                    pl.BlockSpec((C, Cp), lambda i: (0, 0), **resident),
                    pl.BlockSpec((1, Cp), lambda i: (0, 0), **resident),
                    pl.BlockSpec((Cp, Cp), lambda i: (0, 0), **resident),
                    pl.BlockSpec((1, Cp), lambda i: (0, 0), **resident),
                ],
                out_specs=pl.BlockSpec((TM, Cp), lambda i: (i, 0)),
            ),
            compiler_params=pltpu.CompilerParams(
                dimension_semantics=("parallel",),
                vmem_limit_bytes=vmem_limit),
            cost_estimate=cost,
        )(x2d, params.w1t, params.b1, params.w2t, params.b2)

    try:
        out = _call(True)
    except Exception:
        # Fallback if single-buffered residency (pl.Buffered(1)) is unsupported.
        out = _call(False)

    if Cp != C:
        out = out[:, :C]
    return out.reshape(orig_shape)


def cr_forward(x, w1, b1, w2, b2, *, compute_dtype=None, tm=512, out_dtype=None):
    """Convenience wrapper: prepares params then runs the kernel.

    For repeated calls with the same weights, call `prepare_params` once and
    reuse it with `cr_forward_prepared` (avoids per-call transpose/pad/cast).
    """
    params = prepare_params(w1, b1, w2, b2, compute_dtype=compute_dtype)
    return cr_forward_prepared(x, params, tm=tm, out_dtype=out_dtype)


def init_params(key, in_channels):
    """Deterministic init mimicking nn.Linear's uniform(-1/sqrt(fan_in), 1/sqrt(fan_in))."""
    k1, k2, k3, k4 = jax.random.split(key, 4)
    bound = 1.0 / jnp.sqrt(jnp.float32(in_channels))
    w1 = jax.random.uniform(k1, (in_channels, in_channels), jnp.float32, -bound, bound)
    b1 = jax.random.uniform(k2, (in_channels,), jnp.float32, -bound, bound)
    w2 = jax.random.uniform(k3, (in_channels, in_channels), jnp.float32, -bound, bound)
    b2 = jax.random.uniform(k4, (in_channels,), jnp.float32, -bound, bound)
    return w1, b1, w2, b2


if __name__ == "__main__":
    key = jax.random.PRNGKey(0)
    kx, kp = jax.random.split(key)

    # Small shapes consistent with the module: batch=2, seq=8, hidden(in_channels)=32.
    B, N, C = 2, 8, 32
    x = jax.random.normal(kx, (B, N, C), dtype=jnp.float32)
    w1, b1, w2, b2 = init_params(kp, C)

    # Pure-JAX reference (same semantics as the PyTorch forward).
    ref = jax.nn.sigmoid(jnp.maximum(x @ w1.T + b1, 0.0) @ w2.T + b2)

    # f32 path — exact match with tight tolerance.
    out = jax.block_until_ready(cr_forward(x, w1, b1, w2, b2))
    assert out.shape == (B, N, C)
    assert jnp.allclose(out, ref, atol=1e-5, rtol=1e-5)

    # Pre-prepared-params path (hot path for repeated calls) — same result.
    params_f32 = prepare_params(w1, b1, w2, b2)
    out2 = jax.block_until_ready(cr_forward_prepared(x, params_f32))
    assert jnp.allclose(out2, ref, atol=1e-5, rtol=1e-5)

    # bf16-operand path (MXU-native on v6e/v7x), f32 accumulation — loose tolerance.
    out_bf16 = jax.block_until_ready(
        cr_forward(x, w1, b1, w2, b2, compute_dtype=jnp.bfloat16))
    assert out_bf16.shape == (B, N, C)
    assert jnp.allclose(out_bf16.astype(jnp.float32), ref, atol=5e-2, rtol=5e-2)

    print("KERNEL_OK")
</pallas_src>

<mosaic_0001>
module attributes {stable_mosaic.version = 11 : i64} {
  func.func @cr_kernel(%arg0: i32, %arg1: memref<16x32xf32, #tpu.memory_space<vmem>>, %arg2: memref<32x128xf32, #tpu.memory_space<vmem>>, %arg3: memref<1x128xf32, #tpu.memory_space<vmem>>, %arg4: memref<128x128xf32, #tpu.memory_space<vmem>>, %arg5: memref<1x128xf32, #tpu.memory_space<vmem>>, %arg6: memref<16x128xf32, #tpu.memory_space<vmem>>) attributes {dimension_semantics = [#tpu.dimension_semantics<parallel>], iteration_bounds = array<i64: 1>, scalar_prefetch = 0 : i64, scratch_operands = 0 : i64, tpu.core_type = #tpu.core_type<tc>, window_params = [{transform_indices = @transform_0, window_bounds = array<i64: 16, 32>}, {pipeline_mode = #tpu.pipeline_mode<synchronous>, transform_indices = @transform_1, window_bounds = array<i64: 32, 128>}, {pipeline_mode = #tpu.pipeline_mode<synchronous>, transform_indices = @transform_2, window_bounds = array<i64: 1, 128>}, {pipeline_mode = #tpu.pipeline_mode<synchronous>, transform_indices = @transform_3, window_bounds = array<i64: 128, 128>}, {pipeline_mode = #tpu.pipeline_mode<synchronous>, transform_indices = @transform_4, window_bounds = array<i64: 1, 128>}, {transform_indices = @transform_5, window_bounds = array<i64: 16, 128>}]} {
    %c0 = arith.constant 0 : index
    %c0_0 = arith.constant 0 : index
    %0 = vector.load %arg1[%c0, %c0_0] : memref<16x32xf32, #tpu.memory_space<vmem>>, vector<16x32xf32>
    %c0_1 = arith.constant 0 : index
    %c0_2 = arith.constant 0 : index
    %1 = vector.load %arg2[%c0_1, %c0_2] : memref<32x128xf32, #tpu.memory_space<vmem>>, vector<32x128xf32>
    %cst = arith.constant dense<0.000000e+00> : vector<16x128xf32>
    %2 = tpu.matmul %0, %1, %cst {dimension_numbers = #tpu.dot_dimension_numbers<[1], [0], [0], [1], [0, 0, 1, 1], [], []>} : vector<16x32xf32>, vector<32x128xf32>, vector<16x128xf32> -> vector<16x128xf32>
    %c0_3 = arith.constant 0 : index
    %c0_4 = arith.constant 0 : index
    %3 = vector.load %arg3[%c0_3, %c0_4] : memref<1x128xf32, #tpu.memory_space<vmem>>, vector<1x128xf32>
    %4 = vector.broadcast %3 : vector<1x128xf32> to vector<16x128xf32>
    %5 = arith.addf %2, %4 : vector<16x128xf32>
    %cst_5 = arith.constant 0.000000e+00 : f32
    %6 = vector.broadcast %cst_5 : f32 to vector<16x128xf32>
    %7 = arith.maximumf %5, %6 : vector<16x128xf32>
    %c0_6 = arith.constant 0 : index
    %c0_7 = arith.constant 0 : index
    %8 = vector.load %arg4[%c0_6, %c0_7] : memref<128x128xf32, #tpu.memory_space<vmem>>, vector<128x128xf32>
    %cst_8 = arith.constant dense<0.000000e+00> : vector<16x128xf32>
    %9 = tpu.matmul %7, %8, %cst_8 {dimension_numbers = #tpu.dot_dimension_numbers<[1], [0], [0], [1], [0, 0, 1, 1], [], []>} : vector<16x128xf32>, vector<128x128xf32>, vector<16x128xf32> -> vector<16x128xf32>
    %c0_9 = arith.constant 0 : index
    %c0_10 = arith.constant 0 : index
    %10 = vector.load %arg5[%c0_9, %c0_10] : memref<1x128xf32, #tpu.memory_space<vmem>>, vector<1x128xf32>
    %11 = vector.broadcast %10 : vector<1x128xf32> to vector<16x128xf32>
    %12 = arith.addf %9, %11 : vector<16x128xf32>
    %13 = arith.negf %12 : vector<16x128xf32>
    %14 = math.exp %13 : vector<16x128xf32>
    %cst_11 = arith.constant 1.000000e+00 : f32
    %15 = vector.broadcast %cst_11 : f32 to vector<16x128xf32>
    %16 = arith.addf %15, %14 : vector<16x128xf32>
    %17 = arith.divf %15, %16 : vector<16x128xf32>
    %c0_12 = arith.constant 0 : index
    %c0_13 = arith.constant 0 : index
    %18 = vector.load %arg6[%c0_12, %c0_13] : memref<16x128xf32, #tpu.memory_space<vmem>>, vector<16x128xf32>
    tpu.vector_store %arg6[%c0_12, %c0_13], %17 {strides = array<i32>} : memref<16x128xf32, #tpu.memory_space<vmem>>, vector<16x128xf32>,
    return
  }
  func.func @transform_0(%arg0: i32) -> (i32, i32) {
    %c0_i32 = arith.constant 0 : i32
    %c0_i32_0 = arith.constant 0 : i32
    return %arg0, %c0_i32 : i32, i32
  }
  func.func @transform_1(%arg0: i32) -> (i32, i32) {
    %c0_i32 = arith.constant 0 : i32
    %c0_i32_0 = arith.constant 0 : i32
    %c0_i32_1 = arith.constant 0 : i32
    return %c0_i32, %c0_i32_0 : i32, i32
  }
  func.func @transform_2(%arg0: i32) -> (i32, i32) {
    %c0_i32 = arith.constant 0 : i32
    %c0_i32_0 = arith.constant 0 : i32
    %c0_i32_1 = arith.constant 0 : i32
    return %c0_i32, %c0_i32_0 : i32, i32
  }
  func.func @transform_3(%arg0: i32) -> (i32, i32) {
    %c0_i32 = arith.constant 0 : i32
    %c0_i32_0 = arith.constant 0 : i32
    %c0_i32_1 = arith.constant 0 : i32
    return %c0_i32, %c0_i32_0 : i32, i32
  }
  func.func @transform_4(%arg0: i32) -> (i32, i32) {
    %c0_i32 = arith.constant 0 : i32
    %c0_i32_0 = arith.constant 0 : i32
    %c0_i32_1 = arith.constant 0 : i32
    return %c0_i32, %c0_i32_0 : i32, i32
  }
  func.func @transform_5(%arg0: i32) -> (i32, i32) {
    %c0_i32 = arith.constant 0 : i32
    %c0_i32_0 = arith.constant 0 : i32
    return %arg0, %c0_i32 : i32, i32
  }
}

module attributes {stable_mosaic.version = 11 : i64} {
  func.func @cr_kernel(%arg0: i32, %arg1: memref<16x32xf32, #tpu.memory_space<vmem>>, %arg2: memref<32x128xf32, #tpu.memory_space<vmem>>, %arg3: memref<1x128xf32, #tpu.memory_space<vmem>>, %arg4: memref<128x128xf32, #tpu.memory_space<vmem>>, %arg5: memref<1x128xf32, #tpu.memory_space<vmem>>, %arg6: memref<16x128xf32, #tpu.memory_space<vmem>>) attributes {dimension_semantics = [#tpu.dimension_semantics<parallel>], iteration_bounds = array<i64: 1>, scalar_prefetch = 0 : i64, scratch_operands = 0 : i64, tpu.core_type = #tpu.core_type<tc>, window_params = [{transform_indices = @transform_0, window_bounds = array<i64: 16, 32>}, {pipeline_mode = #tpu.pipeline_mode<synchronous>, transform_indices = @transform_1, window_bounds = array<i64: 32, 128>}, {pipeline_mode = #tpu.pipeline_mode<synchronous>, transform_indices = @transform_2, window_bounds = array<i64: 1, 128>}, {pipeline_mode = #tpu.pipeline_mode<synchronous>, transform_indices = @transform_3, window_bounds = array<i64: 128, 128>}, {pipeline_mode = #tpu.pipeline_mode<synchronous>, transform_indices = @transform_4, window_bounds = array<i64: 1, 128>}, {transform_indices = @transform_5, window_bounds = array<i64: 16, 128>}]} {
    %c0 = arith.constant 0 : index
    %c0_0 = arith.constant 0 : index
    %0 = vector.load %arg1[%c0, %c0_0] : memref<16x32xf32, #tpu.memory_space<vmem>>, vector<16x32xf32>
    %c0_1 = arith.constant 0 : index
    %c0_2 = arith.constant 0 : index
    %1 = vector.load %arg2[%c0_1, %c0_2] : memref<32x128xf32, #tpu.memory_space<vmem>>, vector<32x128xf32>
    %cst = arith.constant dense<0.000000e+00> : vector<16x128xf32>
    %2 = tpu.matmul %0, %1, %cst {dimension_numbers = #tpu.dot_dimension_numbers<[1], [0], [0], [1], [0, 0, 1, 1], [], []>} : vector<16x32xf32>, vector<32x128xf32>, vector<16x128xf32> -> vector<16x128xf32>
    %c0_3 = arith.constant 0 : index
    %c0_4 = arith.constant 0 : index
    %3 = vector.load %arg3[%c0_3, %c0_4] : memref<1x128xf32, #tpu.memory_space<vmem>>, vector<1x128xf32>
    %4 = vector.broadcast %3 : vector<1x128xf32> to vector<16x128xf32>
    %5 = arith.addf %2, %4 : vector<16x128xf32>
    %cst_5 = arith.constant 0.000000e+00 : f32
    %6 = vector.broadcast %cst_5 : f32 to vector<16x128xf32>
    %7 = arith.maximumf %5, %6 : vector<16x128xf32>
    %c0_6 = arith.constant 0 : index
    %c0_7 = arith.constant 0 : index
    %8 = vector.load %arg4[%c0_6, %c0_7] : memref<128x128xf32, #tpu.memory_space<vmem>>, vector<128x128xf32>
    %cst_8 = arith.constant dense<0.000000e+00> : vector<16x128xf32>
    %9 = tpu.matmul %7, %8, %cst_8 {dimension_numbers = #tpu.dot_dimension_numbers<[1], [0], [0], [1], [0, 0, 1, 1], [], []>} : vector<16x128xf32>, vector<128x128xf32>, vector<16x128xf32> -> vector<16x128xf32>
    %c0_9 = arith.constant 0 : index
    %c0_10 = arith.constant 0 : index
    %10 = vector.load %arg5[%c0_9, %c0_10] : memref<1x128xf32, #tpu.memory_space<vmem>>, vector<1x128xf32>
    %11 = vector.broadcast %10 : vector<1x128xf32> to vector<16x128xf32>
    %12 = arith.addf %9, %11 : vector<16x128xf32>
    %13 = arith.negf %12 : vector<16x128xf32>
    %14 = math.exp %13 : vector<16x128xf32>
    %cst_11 = arith.constant 1.000000e+00 : f32
    %15 = vector.broadcast %cst_11 : f32 to vector<16x128xf32>
    %16 = arith.addf %15, %14 : vector<16x128xf32>
    %17 = arith.divf %15, %16 : vector<16x128xf32>
    %c0_12 = arith.constant 0 : index
    %c0_13 = arith.constant 0 : index
    %18 = vector.load %arg6[%c0_12, %c0_13] : memref<16x128xf32, #tpu.memory_space<vmem>>, vector<16x128xf32>
    tpu.vector_store %arg6[%c0_12, %c0_13], %17 {strides = array<i32>} : memref<16x128xf32, #tpu.memory_space<vmem>>, vector<16x128xf32>,
    return
  }
  func.func @transform_0(%arg0: i32) -> (i32, i32) {
    %c0_i32 = arith.constant 0 : i32
    %c0_i32_0 = arith.constant 0 : i32
    return %arg0, %c0_i32 : i32, i32
  }
  func.func @transform_1(%arg0: i32) -> (i32, i32) {
    %c0_i32 = arith.constant 0 : i32
    %c0_i32_0 = arith.constant 0 : i32
    %c0_i32_1 = arith.constant 0 : i32
    return %c0_i32, %c0_i32_0 : i32, i32
  }
  func.func @transform_2(%arg0: i32) -> (i32, i32) {
    %c0_i32 = arith.constant 0 : i32
    %c0_i32_0 = arith.constant 0 : i32
    %c0_i32_1 = arith.constant 0 : i32
    return %c0_i32, %c0_i32_0 : i32, i32
  }
  func.func @transform_3(%arg0: i32) -> (i32, i32) {
    %c0_i32 = arith.constant 0 : i32
    %c0_i32_0 = arith.constant 0 : i32
    %c0_i32_1 = arith.constant 0 : i32
    return %c0_i32, %c0_i32_0 : i32, i32
  }
  func.func @transform_4(%arg0: i32) -> (i32, i32) {
    %c0_i32 = arith.constant 0 : i32
    %c0_i32_0 = arith.constant 0 : i32
    %c0_i32_1 = arith.constant 0 : i32
    return %c0_i32, %c0_i32_0 : i32, i32
  }
  func.func @transform_5(%arg0: i32) -> (i32, i32) {
    %c0_i32 = arith.constant 0 : i32
    %c0_i32_0 = arith.constant 0 : i32
    return %arg0, %c0_i32 : i32, i32
  }
}

</mosaic_0001>

<llo_original>
// kernel: tpu_custom_call.1
$region0: #{tpu_custom_call.1}
  #allocation0 [shape = 'u32[]', space=smem, size = 0x4, offset = 0x4, fixed_abs, tag = 'smem constant byte address 0x4 - core index']
  #allocation1 [shape = 'u32[144,128]{1,0:T(1,128)}', space=vmem, size = 0x12000, scoped, tag = 'internal scratch']
  %s0 = inlined_call_operand.hbm [shape: f32[16,32], index: 0, kind: input, shape index: {}]
  %s1 = inlined_call_operand.hbm [shape: f32[32,128], index: 1, kind: input, shape index: {}]
  %s2 = inlined_call_operand.vmem [shape: f32[1,128], index: 2, kind: input, shape index: {}]
  %s3 = inlined_call_operand.hbm [shape: f32[128,128], index: 3, kind: input, shape index: {}]
  %s4 = inlined_call_operand.vmem [shape: f32[1,128], index: 4, kind: input, shape index: {}]
  %s5 = inlined_call_operand.hbm [shape: f32[16,128], index: 5, kind: output, shape index: {}]
  %s6 = sld [smem:[#allocation0]]
  $region42: #{tpu_custom_call.1} parent=0
    _
  %s8 = ssub.s32 1, %s6
  %s9 = scalar_select 0, %s8, %s6
  $region1: #{tpu_custom_call.1} parent=0
    #allocation2 [shape = 'u8[8192]{0}', space=vmem, size = 0x2000, scoped, tag = 'input window, operand 0, single buffered']
    #allocation3 [shape = 's32[1]{0}', space=sflag, size = 0x4, scoped, tag = 'scoped memory for tpu_custom_call.1']
    #allocation4 [shape = 's32[1]{0}', space=sflag, size = 0x4, scoped, tag = 'scoped memory for tpu_custom_call.1']
    #allocation5 [shape = 'u8[16384]{0}', space=vmem, size = 0x4000, scoped, tag = 'input window, operand 1, single buffered']
    #allocation6 [shape = 's32[1]{0}', space=sflag, size = 0x4, scoped, tag = 'scoped memory for tpu_custom_call.1']
    #allocation7 [shape = 'u8[65536]{0}', space=vmem, size = 0x10000, scoped, tag = 'input window, operand 3, single buffered']
    #allocation8 [shape = 'u8[8192]{0}', space=vmem, size = 0x2000, scoped, tag = 'output window, operand 0, single buffered']
    %10 = vsyncpa [#allocation3], 0
    %11 = vsyncpa [#allocation6], 0
    %12 = vsyncpa [#allocation4], 0
    // Predicated region
    $region2: #{tpu_custom_call.1} parent=1 // pred_check
      _
    $region3: #{tpu_custom_call.1} parent=1 // pred_check_branch
      %14 = sbr.rel (0) target = $region5
    $region4: #{tpu_custom_call.1} parent=1 // pred_region
      %s16 = ssub.s32 256, 256
      %17 = vsyncadd [#allocation3], %s16
      %s18 = sshll.u32 [#allocation2], 4
      %s19 = int_to_ptr.vmem [resolvable:$true] %s18
      %24 = dma.hbm_to_vmem [thread:$0]  %s0, 256, %s19, [#allocation3], 128, 128, 8
    $region5: #{tpu_custom_call.1} parent=1 // pred_fallthru
      _
    // Predicated region
    $region6: #{tpu_custom_call.1} parent=1 // pred_check
      _
    $region7: #{tpu_custom_call.1} parent=1 // pred_check_branch
      %26 = sbr.rel (0) target = $region9
    $region8: #{tpu_custom_call.1} parent=1 // pred_region
      %s28 = ssub.s32 512, 512
      %29 = vsyncadd [#allocation6], %s28
      %s30 = sshll.u32 [#allocation5], 4
      %s31 = int_to_ptr.vmem [resolvable:$true] %s30
      %36 = dma.hbm_to_vmem [thread:$0]  %s1, 512, %s31, [#allocation6], 128, 128, 8
    $region9: #{tpu_custom_call.1} parent=1 // pred_fallthru
      _
    // Predicated region
    $region10: #{tpu_custom_call.1} parent=1 // pred_check
      _
    $region11: #{tpu_custom_call.1} parent=1 // pred_check_branch
      %38 = sbr.rel (0) target = $region13
    $region12: #{tpu_custom_call.1} parent=1 // pred_region
      _
    $region13: #{tpu_custom_call.1} parent=1 // pred_fallthru
      _
    // Predicated region
    $region14: #{tpu_custom_call.1} parent=1 // pred_check
      _
    $region15: #{tpu_custom_call.1} parent=1 // pred_check_branch
      %40 = sbr.rel (0) target = $region17
    $region16: #{tpu_custom_call.1} parent=1 // pred_region
      %s42 = ssub.s32 2048, 2048
      %43 = vsyncadd [#allocation6], %s42
      %s44 = sshll.u32 [#allocation7], 4
      %s45 = int_to_ptr.vmem [resolvable:$true] %s44
      %50 = dma.hbm_to_vmem [thread:$0]  %s3, 2048, %s45, [#allocation6], 128, 128, 8
    $region17: #{tpu_custom_call.1} parent=1 // pred_fallthru
      _
    // Predicated region
    $region18: #{tpu_custom_call.1} parent=1 // pred_check
      _
    $region19: #{tpu_custom_call.1} parent=1 // pred_check_branch
      %52 = sbr.rel (0) target = $region21
    $region20: #{tpu_custom_call.1} parent=1 // pred_region
      _
    $region21: #{tpu_custom_call.1} parent=1 // pred_fallthru
      _
    // Predicated region
    $region22: #{tpu_custom_call.1} parent=1 // pred_check
      _
    $region23: #{tpu_custom_call.1} parent=1 // pred_check_branch
      %54 = sbr.rel (0) target = $region25
    $region24: #{tpu_custom_call.1} parent=1 // pred_region
      %55 = dma.done [#allocation3], 256
    $region25: #{tpu_custom_call.1} parent=1 // pred_fallthru
      _
    // Predicated region
    $region26: #{tpu_custom_call.1} parent=1 // pred_check
      _
    $region27: #{tpu_custom_call.1} parent=1 // pred_check_branch
      %57 = sbr.rel (0) target = $region29
    $region28: #{tpu_custom_call.1} parent=1 // pred_region
      %58 = dma.done [#allocation6], 512
    $region29: #{tpu_custom_call.1} parent=1 // pred_fallthru
      _
    // Predicated region
    $region30: #{tpu_custom_call.1} parent=1 // pred_check
      _
    $region31: #{tpu_custom_call.1} parent=1 // pred_check_branch
      %60 = sbr.rel (0) target = $region33
    $region32: #{tpu_custom_call.1} parent=1 // pred_region
      %61 = dma.done [#allocation6], 2048
    $region33: #{tpu_custom_call.1} parent=1 // pred_fallthru
      _
    %v62 = vld [vmem:[#allocation2] sm:$0xff]
    %v63 = vld [vmem:[#allocation2 + $0x8] sm:$0xff]
    %v64 = vld [vmem:[#allocation5] sm:$0xff]
    %v65 = vld [vmem:[#allocation5 + $0x8] sm:$0xff]
    %v66 = vld [vmem:[#allocation5 + $0x10] sm:$0xff]
    %v67 = vld [vmem:[#allocation5 + $0x18] sm:$0xff]
    %v68 = vld [vmem:[%s2] sm:$0x1]
    %v70 = vlaneseq
    %v71 = vshrl.u32 %v70, 7
    %v72 = vsub.s32 0, %v71
    %v73 = vrot.slane %v68, %v72
    %vm75 = vcmask 261120
    %v77 = vsel %vm75, %v62, 0
    %v80 = vsel %vm75, %v63, 0
    %82 = vmatprep.subr.mxu0 0.0
    %83 = vmatpush1.msra.mxu0 0.0
    %84 = vmatprep.subr.mxu0 0.0
    %85 = vmatpush1.msra.mxu0 0.0
    %86 = vmatprep.subr.mxu0 0.0
    %87 = vmatpush1.msra.mxu0 0.0
    %88 = vmatprep.subr.mxu0 0.0
    %89 = vmatpush1.msra.mxu0 0.0
    %90 = vmatprep.subr.mxu0 0.0
    %91 = vmatpush1.msra.mxu0 0.0
    %92 = vmatprep.subr.mxu0 0.0
    %93 = vmatpush1.msra.mxu0 0.0
    %94 = vmatprep.subr.mxu0 0.0
    %95 = vmatpush1.msra.mxu0 0.0
    %96 = vmatprep.subr.mxu0 0.0
    %97 = vmatpush1.msra.mxu0 0.0
    %98 = vmatprep.subr.mxu0 0.0
    %99 = vmatpush1.msra.mxu0 0.0
    %100 = vmatprep.subr.mxu0 0.0
    %101 = vmatpush1.msra.mxu0 0.0
    %102 = vmatprep.subr.mxu0 0.0
    %103 = vmatpush1.msra.mxu0 0.0
    %104 = vmatprep.subr.mxu0 0.0
    %105 = vmatpush1.msra.mxu0 0.0
    %106 = vmatprep.subr.mxu0 0.0
    %107 = vmatpush1.msra.mxu0 %v67
    %108 = vmatprep.subr.mxu0 0.0
    %109 = vmatpush1.msra.mxu0 %v66
    %110 = vmatprep.subr.mxu0 0.0
    %111 = vmatpush1.msra.mxu0 %v65
    %112 = vmatprep.subr.mxu0 0.0
    %113 = vmatpush1.msra.mxu0 %v64
    %114 = vmatprep.subr.mxu0 0.0
    %115 = vmatpush2.msra.mxu0 0.0
    %116 = vmatprep.subr.mxu0 0.0
    %117 = vmatpush2.msra.mxu0 0.0
    %118 = vmatprep.subr.mxu0 0.0
    %119 = vmatpush2.msra.mxu0 0.0
    %120 = vmatprep.subr.mxu0 0.0
    %121 = vmatpush2.msra.mxu0 0.0
    %122 = vmatprep.subr.mxu0 0.0
    %123 = vmatpush2.msra.mxu0 0.0
    %124 = vmatprep.subr.mxu0 0.0
    %125 = vmatpush2.msra.mxu0 0.0
    %126 = vmatprep.subr.mxu0 0.0
    %127 = vmatpush2.msra.mxu0 0.0
    %128 = vmatprep.subr.mxu0 0.0
    %129 = vmatpush2.msra.mxu0 0.0
    %130 = vmatprep.subr.mxu0 0.0
    %131 = vmatpush2.msra.mxu0 0.0
    %132 = vmatprep.subr.mxu0 0.0
    %133 = vmatpush2.msra.mxu0 0.0
    %134 = vmatprep.subr.mxu0 0.0
    %135 = vmatpush2.msra.mxu0 0.0
    %136 = vmatprep.subr.mxu0 0.0
    %137 = vmatpush2.msra.mxu0 0.0
    %138 = vmatprep.subr.mxu0 0.0
    %139 = vmatpush2.msra.mxu0 0.0
    %140 = vmatprep.subr.mxu0 0.0
    %141 = vmatpush2.msra.mxu0 0.0
    %142 = vmatprep.subr.mxu0 0.0
    %143 = vmatpush2.msra.mxu0 0.0
    %144 = vmatprep.subr.mxu0 0.0
    %145 = vmatpush2.msra.mxu0 0.0
    %146 = vmatprep.mubr.f32.mxu0 0.0
    %147 = vmatmul.mubr.f32.gmra.mxu0 %v77
    %v148 = vpop.f32.mrf.mxu0
    %v149 = vadd.f32 %v73, %v148
    %v150 = vpop.f32.mrf.mxu0
    %151 = vmatprep.mubr.f32.mxu0 0.0
    %152 = vmatmul.mubr.f32.gmra.mxu0 %v80
    %v153 = vpop.f32.mrf.mxu0
    %v154 = vadd.f32 %v73, %v153
    %v155 = vpop.f32.mrf.mxu0
    %156 = vdwg.mxu0
    %v157 = vmax.f32 %v149, 0.0
    %v158 = vmax.f32 %v154, 0.0
    %v159 = vld [vmem:[#allocation7] sm:$0xff]
    %v160 = vld [vmem:[#allocation7 + $0x8] sm:$0xff]
    %v161 = vld [vmem:[#allocation7 + $0x10] sm:$0xff]
    %v162 = vld [vmem:[#allocation7 + $0x18] sm:$0xff]
    %v163 = vld [vmem:[#allocation7 + $0x20] sm:$0xff]
    %v164 = vld [vmem:[#allocation7 + $0x28] sm:$0xff]
    %v165 = vld [vmem:[#allocation7 + $0x30] sm:$0xff]
    %v166 = vld [vmem:[#allocation7 + $0x38] sm:$0xff]
    %v167 = vld [vmem:[#allocation7 + $0x40] sm:$0xff]
    %v168 = vld [vmem:[#allocation7 + $0x48] sm:$0xff]
    %v169 = vld [vmem:[#allocation7 + $0x50] sm:$0xff]
    %v170 = vld [vmem:[#allocation7 + $0x58] sm:$0xff]
    %v171 = vld [vmem:[#allocation7 + $0x60] sm:$0xff]
    %v172 = vld [vmem:[#allocation7 + $0x68] sm:$0xff]
    %v173 = vld [vmem:[#allocation7 + $0x70] sm:$0xff]
    %v174 = vld [vmem:[#allocation7 + $0x78] sm:$0xff]
    %v175 = vld [vmem:[%s4] sm:$0x1]
    %v177 = vlaneseq
    %v178 = vshrl.u32 %v177, 7
    %v179 = vsub.s32 0, %v178
    %v180 = vrot.slane %v175, %v179
    %182 = vmatprep.subr.mxu0 0.0
    %183 = vmatpush1.msra.mxu0 %v174
    %184 = vmatprep.subr.mxu0 0.0
    %185 = vmatpush1.msra.mxu0 %v173
    %186 = vmatprep.subr.mxu0 0.0
    %187 = vmatpush1.msra.mxu0 %v172
    %188 = vmatprep.subr.mxu0 0.0
    %189 = vmatpush1.msra.mxu0 %v171
    %190 = vmatprep.subr.mxu0 0.0
    %191 = vmatpush1.msra.mxu0 %v170
    %192 = vmatprep.subr.mxu0 0.0
    %193 = vmatpush1.msra.mxu0 %v169
    %194 = vmatprep.subr.mxu0 0.0
    %195 = vmatpush1.msra.mxu0 %v168
    %196 = vmatprep.subr.mxu0 0.0
    %197 = vmatpush1.msra.mxu0 %v167
    %198 = vmatprep.subr.mxu0 0.0
    %199 = vmatpush1.msra.mxu0 %v166
    %200 = vmatprep.subr.mxu0 0.0
    %201 = vmatpush1.msra.mxu0 %v165
    %202 = vmatprep.subr.mxu0 0.0
    %203 = vmatpush1.msra.mxu0 %v164
    %204 = vmatprep.subr.mxu0 0.0
    %205 = vmatpush1.msra.mxu0 %v163
    %206 = vmatprep.subr.mxu0 0.0
    %207 = vmatpush1.msra.mxu0 %v162
    %208 = vmatprep.subr.mxu0 0.0
    %209 = vmatpush1.msra.mxu0 %v161
    %210 = vmatprep.subr.mxu0 0.0
    %211 = vmatpush1.msra.mxu0 %v160
    %212 = vmatprep.subr.mxu0 0.0
    %213 = vmatpush1.msra.mxu0 %v159
    %214 = vmatprep.subr.mxu0 0.0
    %215 = vmatpush2.msra.mxu0 0.0
    %216 = vmatprep.subr.mxu0 0.0
    %217 = vmatpush2.msra.mxu0 0.0
    %218 = vmatprep.subr.mxu0 0.0
    %219 = vmatpush2.msra.mxu0 0.0
    %220 = vmatprep.subr.mxu0 0.0
    %221 = vmatpush2.msra.mxu0 0.0
    %222 = vmatprep.subr.mxu0 0.0
    %223 = vmatpush2.msra.mxu0 0.0
    %224 = vmatprep.subr.mxu0 0.0
    %225 = vmatpush2.msra.mxu0 0.0
    %226 = vmatprep.subr.mxu0 0.0
    %227 = vmatpush2.msra.mxu0 0.0
    %228 = vmatprep.subr.mxu0 0.0
    %229 = vmatpush2.msra.mxu0 0.0
    %230 = vmatprep.subr.mxu0 0.0
    %231 = vmatpush2.msra.mxu0 0.0
    %232 = vmatprep.subr.mxu0 0.0
    %233 = vmatpush2.msra.mxu0 0.0
    %234 = vmatprep.subr.mxu0 0.0
    %235 = vmatpush2.msra.mxu0 0.0
    %236 = vmatprep.subr.mxu0 0.0
    %237 = vmatpush2.msra.mxu0 0.0
    %238 = vmatprep.subr.mxu0 0.0
    %239 = vmatpush2.msra.mxu0 0.0
    %240 = vmatprep.subr.mxu0 0.0
    %241 = vmatpush2.msra.mxu0 0.0
    %242 = vmatprep.subr.mxu0 0.0
    %243 = vmatpush2.msra.mxu0 0.0
    %244 = vmatprep.subr.mxu0 0.0
    %245 = vmatpush2.msra.mxu0 0.0
    %246 = vmatprep.mubr.f32.mxu0 0.0
    %247 = vmatmul.mubr.f32.gmra.mxu0 %v157
    %v248 = vpop.f32.mrf.mxu0
    %v249 = vadd.f32 %v180, %v248
    %v250 = vpop.f32.mrf.mxu0
    %251 = vmatprep.mubr.f32.mxu0 0.0
    %252 = vmatmul.mubr.f32.gmra.mxu0 %v158
    %v253 = vpop.f32.mrf.mxu0
    %v254 = vadd.f32 %v180, %v253
    %v255 = vpop.f32.mrf.mxu0
    %256 = vdwg.mxu0
    %v257 = vxor.u32 %v249, 2147483648
    %v258 = vxor.u32 %v254, 2147483648
    %v259 = vmul.f32 %v257, 1.442695
    %v260 = vpow.pop %v259
    %v261 = vmul.f32 %v258, 1.442695
    %v262 = vpow.pop %v261
    %v263 = vadd.f32 %v260, 1.0
    %v264 = vadd.f32 %v262, 1.0
    %v265 = vrcp.pop %v263
    %v266 = vmul.f32 1.0, %v265
    %v267 = vrcp.pop %v264
    %v268 = vmul.f32 1.0, %v267
    %269 = vst [vmem:[#allocation8] sm:$0xff] %v266
    %270 = vst [vmem:[#allocation8 + $0x8] sm:$0xff] %v268
    // Predicated region
    $region34: #{tpu_custom_call.1} parent=1 // pred_check
      _
    $region35: #{tpu_custom_call.1} parent=1 // pred_check_branch
      %272 = sbr.rel (0) target = $region37
    $region36: #{tpu_custom_call.1} parent=1 // pred_region
      %s274 = ssub.s32 256, 256
      %275 = vsyncadd [#allocation4], %s274
      %s276 = sshll.u32 [#allocation8], 4
      %s277 = int_to_ptr.vmem [resolvable:$true] %s276
      %282 = dma.vmem_to_hbm [thread:$0]  %s277, 256, %s5, [#allocation4], 128, 128, 8
    $region37: #{tpu_custom_call.1} parent=1 // pred_fallthru
      _
    // Predicated region
    $region38: #{tpu_custom_call.1} parent=1 // pred_check
      _
    $region39: #{tpu_custom_call.1} parent=1 // pred_check_branch
      %284 = sbr.rel (0) target = $region41
    $region40: #{tpu_custom_call.1} parent=1 // pred_region
      %285 = dma.done [#allocation4], 256
    $region41: #{tpu_custom_call.1} parent=1 // pred_fallthru
      _
    %286 = vsyncpa [#allocation3], 1
    %287 = vsyncpa [#allocation6], 1
    %288 = vsyncpa [#allocation4], 1

// kernel: tpu_custom_call.1
$region0: #{tpu_custom_call.1}
  #allocation0 [shape = 'u32[]', space=smem, size = 0x4, offset = 0x4, fixed_abs, tag = 'smem constant byte address 0x4 - core index']
  #allocation1 [shape = 'u32[144,128]{1,0:T(1,128)}', space=vmem, size = 0x12000, scoped, tag = 'internal scratch']
  %s0 = inlined_call_operand.hbm [shape: f32[16,32], index: 0, kind: input, shape index: {}]
  %s1 = inlined_call_operand.hbm [shape: f32[32,128], index: 1, kind: input, shape index: {}]
  %s2 = inlined_call_operand.vmem [shape: f32[1,128], index: 2, kind: input, shape index: {}]
  %s3 = inlined_call_operand.hbm [shape: f32[128,128], index: 3, kind: input, shape index: {}]
  %s4 = inlined_call_operand.vmem [shape: f32[1,128], index: 4, kind: input, shape index: {}]
  %s5 = inlined_call_operand.hbm [shape: f32[16,128], index: 5, kind: output, shape index: {}]
  %s6 = sld [smem:[#allocation0]]
  $region42: #{tpu_custom_call.1} parent=0
    _
  %s8 = ssub.s32 1, %s6
  %s9 = scalar_select 0, %s8, %s6
  $region1: #{tpu_custom_call.1} parent=0
    #allocation2 [shape = 'u8[8192]{0}', space=vmem, size = 0x2000, scoped, tag = 'input window, operand 0, single buffered']
    #allocation3 [shape = 's32[1]{0}', space=sflag, size = 0x4, scoped, tag = 'scoped memory for tpu_custom_call.1']
    #allocation4 [shape = 's32[1]{0}', space=sflag, size = 0x4, scoped, tag = 'scoped memory for tpu_custom_call.1']
    #allocation5 [shape = 'u8[16384]{0}', space=vmem, size = 0x4000, scoped, tag = 'input window, operand 1, single buffered']
    #allocation6 [shape = 's32[1]{0}', space=sflag, size = 0x4, scoped, tag = 'scoped memory for tpu_custom_call.1']
    #allocation7 [shape = 'u8[65536]{0}', space=vmem, size = 0x10000, scoped, tag = 'input window, operand 3, single buffered']
    #allocation8 [shape = 'u8[8192]{0}', space=vmem, size = 0x2000, scoped, tag = 'output window, operand 0, single buffered']
    %10 = vsyncpa [#allocation3], 0
    %11 = vsyncpa [#allocation6], 0
    %12 = vsyncpa [#allocation4], 0
    // Predicated region
    $region2: #{tpu_custom_call.1} parent=1 // pred_check
      _
    $region3: #{tpu_custom_call.1} parent=1 // pred_check_branch
      %14 = sbr.rel (0) target = $region5
    $region4: #{tpu_custom_call.1} parent=1 // pred_region
      %s16 = ssub.s32 256, 256
      %17 = vsyncadd [#allocation3], %s16
      %s18 = sshll.u32 [#allocation2], 4
      %s19 = int_to_ptr.vmem [resolvable:$true] %s18
      %24 = dma.hbm_to_vmem [thread:$0]  %s0, 256, %s19, [#allocation3], 128, 128, 8
    $region5: #{tpu_custom_call.1} parent=1 // pred_fallthru
      _
    // Predicated region
    $region6: #{tpu_custom_call.1} parent=1 // pred_check
      _
    $region7: #{tpu_custom_call.1} parent=1 // pred_check_branch
      %26 = sbr.rel (0) target = $region9
    $region8: #{tpu_custom_call.1} parent=1 // pred_region
      %s28 = ssub.s32 512, 512
      %29 = vsyncadd [#allocation6], %s28
      %s30 = sshll.u32 [#allocation5], 4
      %s31 = int_to_ptr.vmem [resolvable:$true] %s30
      %36 = dma.hbm_to_vmem [thread:$0]  %s1, 512, %s31, [#allocation6], 128, 128, 8
    $region9: #{tpu_custom_call.1} parent=1 // pred_fallthru
      _
    // Predicated region
    $region10: #{tpu_custom_call.1} parent=1 // pred_check
      _
    $region11: #{tpu_custom_call.1} parent=1 // pred_check_branch
      %38 = sbr.rel (0) target = $region13
    $region12: #{tpu_custom_call.1} parent=1 // pred_region
      _
    $region13: #{tpu_custom_call.1} parent=1 // pred_fallthru
      _
    // Predicated region
    $region14: #{tpu_custom_call.1} parent=1 // pred_check
      _
    $region15: #{tpu_custom_call.1} parent=1 // pred_check_branch
      %40 = sbr.rel (0) target = $region17
    $region16: #{tpu_custom_call.1} parent=1 // pred_region
      %s42 = ssub.s32 2048, 2048
      %43 = vsyncadd [#allocation6], %s42
      %s44 = sshll.u32 [#allocation7], 4
      %s45 = int_to_ptr.vmem [resolvable:$true] %s44
      %50 = dma.hbm_to_vmem [thread:$0]  %s3, 2048, %s45, [#allocation6], 128, 128, 8
    $region17: #{tpu_custom_call.1} parent=1 // pred_fallthru
      _
    // Predicated region
    $region18: #{tpu_custom_call.1} parent=1 // pred_check
      _
    $region19: #{tpu_custom_call.1} parent=1 // pred_check_branch
      %52 = sbr.rel (0) target = $region21
    $region20: #{tpu_custom_call.1} parent=1 // pred_region
      _
    $region21: #{tpu_custom_call.1} parent=1 // pred_fallthru
      _
    // Predicated region
    $region22: #{tpu_custom_call.1} parent=1 // pred_check
      _
    $region23: #{tpu_custom_call.1} parent=1 // pred_check_branch
      %54 = sbr.rel (0) target = $region25
    $region24: #{tpu_custom_call.1} parent=1 // pred_region
      %55 = dma.done [#allocation3], 256
    $region25: #{tpu_custom_call.1} parent=1 // pred_fallthru
      _
    // Predicated region
    $region26: #{tpu_custom_call.1} parent=1 // pred_check
      _
    $region27: #{tpu_custom_call.1} parent=1 // pred_check_branch
      %57 = sbr.rel (0) target = $region29
    $region28: #{tpu_custom_call.1} parent=1 // pred_region
      %58 = dma.done [#allocation6], 512
    $region29: #{tpu_custom_call.1} parent=1 // pred_fallthru
      _
    // Predicated region
    $region30: #{tpu_custom_call.1} parent=1 // pred_check
      _
    $region31: #{tpu_custom_call.1} parent=1 // pred_check_branch
      %60 = sbr.rel (0) target = $region33
    $region32: #{tpu_custom_call.1} parent=1 // pred_region
      %61 = dma.done [#allocation6], 2048
    $region33: #{tpu_custom_call.1} parent=1 // pred_fallthru
      _
    %v62 = vld [vmem:[#allocation2] sm:$0xff]
    %v63 = vld [vmem:[#allocation2 + $0x8] sm:$0xff]
    %v64 = vld [vmem:[#allocation5] sm:$0xff]
    %v65 = vld [vmem:[#allocation5 + $0x8] sm:$0xff]
    %v66 = vld [vmem:[#allocation5 + $0x10] sm:$0xff]
    %v67 = vld [vmem:[#allocation5 + $0x18] sm:$0xff]
    %v68 = vld [vmem:[%s2] sm:$0x1]
    %v70 = vlaneseq
    %v71 = vshrl.u32 %v70, 7
    %v72 = vsub.s32 0, %v71
    %v73 = vrot.slane %v68, %v72
    %vm75 = vcmask 261120
    %v77 = vsel %vm75, %v62, 0
    %v80 = vsel %vm75, %v63, 0
    %82 = vmatprep.subr.mxu0 0.0
    %83 = vmatpush1.msra.mxu0 0.0
    %84 = vmatprep.subr.mxu0 0.0
    %85 = vmatpush1.msra.mxu0 0.0
    %86 = vmatprep.subr.mxu0 0.0
    %87 = vmatpush1.msra.mxu0 0.0
    %88 = vmatprep.subr.mxu0 0.0
    %89 = vmatpush1.msra.mxu0 0.0
    %90 = vmatprep.subr.mxu0 0.0
    %91 = vmatpush1.msra.mxu0 0.0
    %92 = vmatprep.subr.mxu0 0.0
    %93 = vmatpush1.msra.mxu0 0.0
    %94 = vmatprep.subr.mxu0 0.0
    %95 = vmatpush1.msra.mxu0 0.0
    %96 = vmatprep.subr.mxu0 0.0
    %97 = vmatpush1.msra.mxu0 0.0
    %98 = vmatprep.subr.mxu0 0.0
    %99 = vmatpush1.msra.mxu0 0.0
    %100 = vmatprep.subr.mxu0 0.0
    %101 = vmatpush1.msra.mxu0 0.0
    %102 = vmatprep.subr.mxu0 0.0
    %103 = vmatpush1.msra.mxu0 0.0
    %104 = vmatprep.subr.mxu0 0.0
    %105 = vmatpush1.msra.mxu0 0.0
    %106 = vmatprep.subr.mxu0 0.0
    %107 = vmatpush1.msra.mxu0 %v67
    %108 = vmatprep.subr.mxu0 0.0
    %109 = vmatpush1.msra.mxu0 %v66
    %110 = vmatprep.subr.mxu0 0.0
    %111 = vmatpush1.msra.mxu0 %v65
    %112 = vmatprep.subr.mxu0 0.0
    %113 = vmatpush1.msra.mxu0 %v64
    %114 = vmatprep.subr.mxu0 0.0
    %115 = vmatpush2.msra.mxu0 0.0
    %116 = vmatprep.subr.mxu0 0.0
    %117 = vmatpush2.msra.mxu0 0.0
    %118 = vmatprep.subr.mxu0 0.0
    %119 = vmatpush2.msra.mxu0 0.0
    %120 = vmatprep.subr.mxu0 0.0
    %121 = vmatpush2.msra.mxu0 0.0
    %122 = vmatprep.subr.mxu0 0.0
    %123 = vmatpush2.msra.mxu0 0.0
    %124 = vmatprep.subr.mxu0 0.0
    %125 = vmatpush2.msra.mxu0 0.0
    %126 = vmatprep.subr.mxu0 0.0
    %127 = vmatpush2.msra.mxu0 0.0
    %128 = vmatprep.subr.mxu0 0.0
    %129 = vmatpush2.msra.mxu0 0.0
    %130 = vmatprep.subr.mxu0 0.0
    %131 = vmatpush2.msra.mxu0 0.0
    %132 = vmatprep.subr.mxu0 0.0
    %133 = vmatpush2.msra.mxu0 0.0
    %134 = vmatprep.subr.mxu0 0.0
    %135 = vmatpush2.msra.mxu0 0.0
    %136 = vmatprep.subr.mxu0 0.0
    %137 = vmatpush2.msra.mxu0 0.0
    %138 = vmatprep.subr.mxu0 0.0
    %139 = vmatpush2.msra.mxu0 0.0
    %140 = vmatprep.subr.mxu0 0.0
    %141 = vmatpush2.msra.mxu0 0.0
    %142 = vmatprep.subr.mxu0 0.0
    %143 = vmatpush2.msra.mxu0 0.0
    %144 = vmatprep.subr.mxu0 0.0
    %145 = vmatpush2.msra.mxu0 0.0
    %146 = vmatprep.mubr.f32.mxu0 0.0
    %147 = vmatmul.mubr.f32.gmra.mxu0 %v77
    %v148 = vpop.f32.mrf.mxu0
    %v149 = vadd.f32 %v73, %v148
    %v150 = vpop.f32.mrf.mxu0
    %151 = vmatprep.mubr.f32.mxu0 0.0
    %152 = vmatmul.mubr.f32.gmra.mxu0 %v80
    %v153 = vpop.f32.mrf.mxu0
    %v154 = vadd.f32 %v73, %v153
    %v155 = vpop.f32.mrf.mxu0
    %156 = vdwg.mxu0
    %v157 = vmax.f32 %v149, 0.0
    %v158 = vmax.f32 %v154, 0.0
    %v159 = vld [vmem:[#allocation7] sm:$0xff]
    %v160 = vld [vmem:[#allocation7 + $0x8] sm:$0xff]
    %v161 = vld [vmem:[#allocation7 + $0x10] sm:$0xff]
    %v162 = vld [vmem:[#allocation7 + $0x18] sm:$0xff]
    %v163 = vld [vmem:[#allocation7 + $0x20] sm:$0xff]
    %v164 = vld [vmem:[#allocation7 + $0x28] sm:$0xff]
    %v165 = vld [vmem:[#allocation7 + $0x30] sm:$0xff]
    %v166 = vld [vmem:[#allocation7 + $0x38] sm:$0xff]
    %v167 = vld [vmem:[#allocation7 + $0x40] sm:$0xff]
    %v168 = vld [vmem:[#allocation7 + $0x48] sm:$0xff]
    %v169 = vld [vmem:[#allocation7 + $0x50] sm:$0xff]
    %v170 = vld [vmem:[#allocation7 + $0x58] sm:$0xff]
    %v171 = vld [vmem:[#allocation7 + $0x60] sm:$0xff]
    %v172 = vld [vmem:[#allocation7 + $0x68] sm:$0xff]
    %v173 = vld [vmem:[#allocation7 + $0x70] sm:$0xff]
    %v174 = vld [vmem:[#allocation7 + $0x78] sm:$0xff]
    %v175 = vld [vmem:[%s4] sm:$0x1]
    %v177 = vlaneseq
    %v178 = vshrl.u32 %v177, 7
    %v179 = vsub.s32 0, %v178
    %v180 = vrot.slane %v175, %v179
    %182 = vmatprep.subr.mxu0 0.0
    %183 = vmatpush1.msra.mxu0 %v174
    %184 = vmatprep.subr.mxu0 0.0
    %185 = vmatpush1.msra.mxu0 %v173
    %186 = vmatprep.subr.mxu0 0.0
    %187 = vmatpush1.msra.mxu0 %v172
    %188 = vmatprep.subr.mxu0 0.0
    %189 = vmatpush1.msra.mxu0 %v171
    %190 = vmatprep.subr.mxu0 0.0
    %191 = vmatpush1.msra.mxu0 %v170
    %192 = vmatprep.subr.mxu0 0.0
    %193 = vmatpush1.msra.mxu0 %v169
    %194 = vmatprep.subr.mxu0 0.0
    %195 = vmatpush1.msra.mxu0 %v168
    %196 = vmatprep.subr.mxu0 0.0
    %197 = vmatpush1.msra.mxu0 %v167
    %198 = vmatprep.subr.mxu0 0.0
    %199 = vmatpush1.msra.mxu0 %v166
    %200 = vmatprep.subr.mxu0 0.0
    %201 = vmatpush1.msra.mxu0 %v165
    %202 = vmatprep.subr.mxu0 0.0
    %203 = vmatpush1.msra.mxu0 %v164
    %204 = vmatprep.subr.mxu0 0.0
    %205 = vmatpush1.msra.mxu0 %v163
    %206 = vmatprep.subr.mxu0 0.0
    %207 = vmatpush1.msra.mxu0 %v162
    %208 = vmatprep.subr.mxu0 0.0
    %209 = vmatpush1.msra.mxu0 %v161
    %210 = vmatprep.subr.mxu0 0.0
    %211 = vmatpush1.msra.mxu0 %v160
    %212 = vmatprep.subr.mxu0 0.0
    %213 = vmatpush1.msra.mxu0 %v159
    %214 = vmatprep.subr.mxu0 0.0
    %215 = vmatpush2.msra.mxu0 0.0
    %216 = vmatprep.subr.mxu0 0.0
    %217 = vmatpush2.msra.mxu0 0.0
    %218 = vmatprep.subr.mxu0 0.0
    %219 = vmatpush2.msra.mxu0 0.0
    %220 = vmatprep.subr.mxu0 0.0
    %221 = vmatpush2.msra.mxu0 0.0
    %222 = vmatprep.subr.mxu0 0.0
    %223 = vmatpush2.msra.mxu0 0.0
    %224 = vmatprep.subr.mxu0 0.0
    %225 = vmatpush2.msra.mxu0 0.0
    %226 = vmatprep.subr.mxu0 0.0
    %227 = vmatpush2.msra.mxu0 0.0
    %228 = vmatprep.subr.mxu0 0.0
    %229 = vmatpush2.msra.mxu0 0.0
    %230 = vmatprep.subr.mxu0 0.0
    %231 = vmatpush2.msra.mxu0 0.0
    %232 = vmatprep.subr.mxu0 0.0
    %233 = vmatpush2.msra.mxu0 0.0
    %234 = vmatprep.subr.mxu0 0.0
    %235 = vmatpush2.msra.mxu0 0.0
    %236 = vmatprep.subr.mxu0 0.0
    %237 = vmatpush2.msra.mxu0 0.0
    %238 = vmatprep.subr.mxu0 0.0
    %239 = vmatpush2.msra.mxu0 0.0
    %240 = vmatprep.subr.mxu0 0.0
    %241 = vmatpush2.msra.mxu0 0.0
    %242 = vmatprep.subr.mxu0 0.0
    %243 = vmatpush2.msra.mxu0 0.0
    %244 = vmatprep.subr.mxu0 0.0
    %245 = vmatpush2.msra.mxu0 0.0
    %246 = vmatprep.mubr.f32.mxu0 0.0
    %247 = vmatmul.mubr.f32.gmra.mxu0 %v157
    %v248 = vpop.f32.mrf.mxu0
    %v249 = vadd.f32 %v180, %v248
    %v250 = vpop.f32.mrf.mxu0
    %251 = vmatprep.mubr.f32.mxu0 0.0
    %252 = vmatmul.mubr.f32.gmra.mxu0 %v158
    %v253 = vpop.f32.mrf.mxu0
    %v254 = vadd.f32 %v180, %v253
    %v255 = vpop.f32.mrf.mxu0
    %256 = vdwg.mxu0
    %v257 = vxor.u32 %v249, 2147483648
    %v258 = vxor.u32 %v254, 2147483648
    %v259 = vmul.f32 %v257, 1.442695
    %v260 = vpow.pop %v259
    %v261 = vmul.f32 %v258, 1.442695
    %v262 = vpow.pop %v261
    %v263 = vadd.f32 %v260, 1.0
    %v264 = vadd.f32 %v262, 1.0
    %v265 = vrcp.pop %v263
    %v266 = vmul.f32 1.0, %v265
    %v267 = vrcp.pop %v264
    %v268 = vmul.f32 1.0, %v267
    %269 = vst [vmem:[#allocation8] sm:$0xff] %v266
    %270 = vst [vmem:[#allocation8 + $0x8] sm:$0xff] %v268
    // Predicated region
    $region34: #{tpu_custom_call.1} parent=1 // pred_check
      _
    $region35: #{tpu_custom_call.1} parent=1 // pred_check_branch
      %272 = sbr.rel (0) target = $region37
    $region36: #{tpu_custom_call.1} parent=1 // pred_region
      %s274 = ssub.s32 256, 256
      %275 = vsyncadd [#allocation4], %s274
      %s276 = sshll.u32 [#allocation8], 4
      %s277 = int_to_ptr.vmem [resolvable:$true] %s276
      %282 = dma.vmem_to_hbm [thread:$0]  %s277, 256, %s5, [#allocation4], 128, 128, 8
    $region37: #{tpu_custom_call.1} parent=1 // pred_fallthru
      _
    // Predicated region
    $region38: #{tpu_custom_call.1} parent=1 // pred_check
      _
    $region39: #{tpu_custom_call.1} parent=1 // pred_check_branch
      %284 = sbr.rel (0) target = $region41
    $region40: #{tpu_custom_call.1} parent=1 // pred_region
      %285 = dma.done [#allocation4], 256
    $region41: #{tpu_custom_call.1} parent=1 // pred_fallthru
      _
    %286 = vsyncpa [#allocation3], 1
    %287 = vsyncpa [#allocation6], 1
    %288 = vsyncpa [#allocation4], 1

</llo_original>
